<compile_context>
chip_gen: v5e
topology: v5e:2x2
jax: 0.10.0
libtpu: 0.0.40
codegen_flags: <defaults>
</compile_context>

<pallas_src>
import jax
import jax.numpy as jnp
from jax.experimental import pallas as pl
from jax.experimental.pallas import tpu as pltpu


def mlp_kernel(x_ref, w1_ref, p_ref, o_ref):
    # x_ref:  [B, D] f32   (VMEM)  -- cast to bf16 in-kernel for the MXU
    # w1_ref: [D, H] bf16  (VMEM)
    # p_ref:  [3, H] f32   (VMEM)  -- row 0 = b1, row 1 = fc2 weight, [2,0] = b2
    # o_ref:  [B, 1] f32
    p = p_ref[...]                                   # [3, H] f32 (one tiny load)
    b1_row = p[0:1, :]                               # [1, H]
    w2_row = p[1:2, :]                               # [1, H]
    b2 = p[2:3, 0:1]                                 # [1, 1]

    # fc1: bf16 MXU matmul with f32 accumulation, then bias + ReLU in f32.
    x_bf16 = x_ref[...].astype(jnp.bfloat16)
    h = jnp.dot(x_bf16, w1_ref[...], preferred_element_type=jnp.float32)
    h = jnp.maximum(h + b1_row, 0.0)                 # [B, H] f32

    # fc2: N=1 matmul -> VPU elementwise mul + XLU lane reduction (MXU stays free).
    z = jnp.sum(h * w2_row, axis=-1, keepdims=True) + b2   # [B, 1]

    # Numerically-safe sigmoid: exp and approx reciprocal both use the EUP slot.
    ez = jnp.exp(-jnp.abs(z))                        # in (0, 1]
    inv = pl.reciprocal(1.0 + ez, approx=True)
    # TODO(synk): if B ever grows large, emit a lane-dense output (e.g. [1, B])
    # instead of [B, 1] to avoid masked vst partial stores on writeback.
    o_ref[...] = jnp.where(z >= 0.0, inv, ez * inv).astype(o_ref.dtype)


def prepare_params(w1, b1, w2, b2):
    """One-time parameter formatting (do NOT call per forward)."""
    D, H = w1.shape
    w1_bf16 = w1.astype(jnp.bfloat16)                # halves the dominant DMA bytes
    packed = jnp.zeros((3, H), jnp.float32)
    packed = packed.at[0, :].set(b1.reshape(H).astype(jnp.float32))
    packed = packed.at[1, :].set(w2.reshape(H).astype(jnp.float32))
    packed = packed.at[2, 0].set(b2.reshape(()).astype(jnp.float32))
    return w1_bf16, packed


@jax.jit
def nn_model_forward(x_nchw, w1_bf16, packed_params):
    B = x_nchw.shape[0]
    x = x_nchw.reshape(B, -1)                        # x.reshape(x.shape[0], -1); bitcast-free
    # No grid: single full-array VMEM blocks (kernel is fixed-overhead bound at
    # these shapes; tiling/parallelizing only pays once B/D/H grow).
    # TODO(synk): if B grows, add a grid over B marked "parallel" so v7x's two
    # TensorCores split the batch; re-check tile VMEM against 64 MiB on v7x.
    return pl.pallas_call(
        mlp_kernel,
        out_shape=jax.ShapeDtypeStruct((B, 1), jnp.float32),
        in_specs=[
            pl.BlockSpec(memory_space=pltpu.MemorySpace.VMEM),   # x (f32)
            pl.BlockSpec(memory_space=pltpu.MemorySpace.VMEM),   # w1 (bf16)
            pl.BlockSpec(memory_space=pltpu.MemorySpace.VMEM),   # packed b1/w2/b2
        ],
        out_specs=pl.BlockSpec(memory_space=pltpu.MemorySpace.VMEM),
    )(x, w1_bf16, packed_params)


def reference_forward(x_nchw, w1, b1, w2, b2):
    x = x_nchw.reshape(x_nchw.shape[0], -1).astype(jnp.float32)
    h = jnp.maximum(x @ w1 + b1, 0.0)
    z = h @ w2 + b2
    return jax.nn.sigmoid(z)


if __name__ == "__main__":
    # Small shapes consistent with the module's forward:
    #   x: [B=2, C=4, H=16, W=16]  -> input_dim = 4*16*16 = 1024
    #   hidden_dim = 32, fc2 output = 1
    B, C, Hs, Ws = 2, 4, 16, 16
    input_dim = C * Hs * Ws
    hidden_dim = 32

    key = jax.random.PRNGKey(0)
    kx, k1, k2, k3, k4 = jax.random.split(key, 5)

    x = jax.random.normal(kx, (B, C, Hs, Ws), dtype=jnp.float32)

    # Linear weights stored already-transposed as [in, out]
    w1 = jax.random.normal(k1, (input_dim, hidden_dim), dtype=jnp.float32) * 0.02
    b1 = jax.random.normal(k2, (1, hidden_dim), dtype=jnp.float32) * 0.02
    w2 = jax.random.normal(k3, (hidden_dim, 1), dtype=jnp.float32) * 0.02
    b2 = jax.random.normal(k4, (1, 1), dtype=jnp.float32) * 0.02

    # One-time parameter formatting (cached across forward calls).
    w1_bf16, packed_params = prepare_params(w1, b1, w2, b2)
    w1_bf16, packed_params = jax.block_until_ready((w1_bf16, packed_params))

    out = nn_model_forward(x, w1_bf16, packed_params)
    out = jax.block_until_ready(out)

    ref = reference_forward(x, w1, b1, w2, b2)
    assert out.shape == (B, 1), out.shape
    # Tolerance relaxed for the bf16 matmul inputs + approx reciprocal (f32
    # accumulation keeps the error well below this; sigmoid output is in (0,1)).
    assert jnp.allclose(out, ref, atol=1e-2, rtol=1e-2), (out, ref)

    print("KERNEL_OK")
</pallas_src>

<mosaic_0001>
module attributes {stable_mosaic.version = 11 : i64} {
  func.func @mlp_kernel(%arg0: memref<2x1024xf32, #tpu.memory_space<vmem>>, %arg1: memref<1024x32xbf16, #tpu.memory_space<vmem>>, %arg2: memref<3x32xf32, #tpu.memory_space<vmem>>, %arg3: memref<2x1xf32, #tpu.memory_space<vmem>>) attributes {dimension_semantics = [], scalar_prefetch = 0 : i64, scratch_operands = 0 : i64, tpu.core_type = #tpu.core_type<tc>} {
    %c0 = arith.constant 0 : index
    %c0_0 = arith.constant 0 : index
    %0 = vector.load %arg2[%c0, %c0_0] : memref<3x32xf32, #tpu.memory_space<vmem>>, vector<3x32xf32>
    %1 = vector.extract_strided_slice %0 {offsets = [0, 0], sizes = [1, 32], strides = [1, 1]} : vector<3x32xf32> to vector<1x32xf32>
    %2 = vector.extract_strided_slice %0 {offsets = [1, 0], sizes = [1, 32], strides = [1, 1]} : vector<3x32xf32> to vector<1x32xf32>
    %3 = vector.extract_strided_slice %0 {offsets = [2, 0], sizes = [1, 1], strides = [1, 1]} : vector<3x32xf32> to vector<1x1xf32>
    %c0_1 = arith.constant 0 : index
    %c0_2 = arith.constant 0 : index
    %4 = vector.load %arg0[%c0_1, %c0_2] : memref<2x1024xf32, #tpu.memory_space<vmem>>, vector<2x1024xf32>
    %5 = arith.truncf %4 : vector<2x1024xf32> to vector<2x1024xbf16>
    %c0_3 = arith.constant 0 : index
    %c0_4 = arith.constant 0 : index
    %6 = vector.load %arg1[%c0_3, %c0_4] : memref<1024x32xbf16, #tpu.memory_space<vmem>>, vector<1024x32xbf16>
    %cst = arith.constant dense<0.000000e+00> : vector<2x32xf32>
    %7 = tpu.matmul %5, %6, %cst {dimension_numbers = #tpu.dot_dimension_numbers<[1], [0], [0], [1], [0, 0, 1, 1], [], []>} : vector<2x1024xbf16>, vector<1024x32xbf16>, vector<2x32xf32> -> vector<2x32xf32>
    %8 = vector.broadcast %1 : vector<1x32xf32> to vector<2x32xf32>
    %9 = arith.addf %7, %8 : vector<2x32xf32>
    %cst_5 = arith.constant 0.000000e+00 : f32
    %10 = vector.broadcast %cst_5 : f32 to vector<2x32xf32>
    %11 = arith.maximumf %9, %10 : vector<2x32xf32>
    %12 = vector.broadcast %2 : vector<1x32xf32> to vector<2x32xf32>
    %13 = arith.mulf %11, %12 : vector<2x32xf32>
    %cst_6 = arith.constant dense<0.000000e+00> : vector<2xf32>
    %14 = vector.multi_reduction <add>, %13, %cst_6 [1] : vector<2x32xf32> to vector<2xf32>
    %15 = vector.shape_cast %14 : vector<2xf32> to vector<2x1xf32>
    %16 = vector.broadcast %3 : vector<1x1xf32> to vector<2x1xf32>
    %17 = arith.addf %15, %16 : vector<2x1xf32>
    %18 = math.absf %17 : vector<2x1xf32>
    %cst_7 = arith.constant 0.000000e+00 : f32
    %19 = vector.broadcast %cst_7 : f32 to vector<2x1xf32>
    %20 = arith.subf %19, %18 : vector<2x1xf32>
    %21 = math.exp %20 : vector<2x1xf32>
    %cst_8 = arith.constant 1.000000e+00 : f32
    %22 = vector.broadcast %cst_8 : f32 to vector<2x1xf32>
    %23 = arith.addf %22, %21 : vector<2x1xf32>
    %24 = tpu.reciprocal %23 {approx = true} : vector<2x1xf32> -> vector<2x1xf32>
    %cst_9 = arith.constant 0.000000e+00 : f32
    %25 = vector.broadcast %cst_9 : f32 to vector<2x1xf32>
    %26 = arith.cmpf oge, %17, %25 : vector<2x1xf32>
    %27 = arith.mulf %21, %24 : vector<2x1xf32>
    %28 = arith.select %26, %24, %27 : vector<2x1xi1>, vector<2x1xf32>
    %c0_10 = arith.constant 0 : index
    %c0_11 = arith.constant 0 : index
    %29 = vector.load %arg3[%c0_10, %c0_11] : memref<2x1xf32, #tpu.memory_space<vmem>>, vector<2x1xf32>
    tpu.vector_store %arg3[%c0_10, %c0_11], %28 {strides = array<i32>} : memref<2x1xf32, #tpu.memory_space<vmem>>, vector<2x1xf32>,
    return
  }
}

</mosaic_0001>

<llo_original>
// kernel: nn_model_forward.1
$region0: #{nn_model_forward.1}
  #allocation0 [shape = 'u32[]', space=smem, size = 0x4, offset = 0x4, fixed_abs, tag = 'smem constant byte address 0x4 - core index']
  #allocation1 [shape = 'u32[72,128]{1,0:T(1,128)}', space=vmem, size = 0x9000, scoped, tag = 'internal scratch']
  %s0 = inlined_call_operand.vmem [shape: f32[2,1024], index: 0, kind: input, shape index: {}]
  %s1 = inlined_call_operand.vmem [shape: bf16[1024,32], index: 1, kind: input, shape index: {}]
  %s2 = inlined_call_operand.vmem [shape: f32[3,32], index: 2, kind: input, shape index: {}]
  %s3 = inlined_call_operand.vmem [shape: f32[2,1], index: 3, kind: output, shape index: {}]
  %s4 = sld [smem:[#allocation0]]
  $region22: #{nn_model_forward.1} parent=0
    _
  %s6 = ssub.s32 1, %s4
  %s7 = scalar_select 0, %s6, %s4
  // Predicated region
  $region2: #{nn_model_forward.1} parent=0 // pred_check
    _
  $region3: #{nn_model_forward.1} parent=0 // pred_check_branch
    %9 = sbr.rel (0) target = $region5
  $region4: #{nn_model_forward.1} parent=0 // pred_region
    _
  $region5: #{nn_model_forward.1} parent=0 // pred_fallthru
    _
  // Predicated region
  $region6: #{nn_model_forward.1} parent=0 // pred_check
    _
  $region7: #{nn_model_forward.1} parent=0 // pred_check_branch
    %11 = sbr.rel (0) target = $region9
  $region8: #{nn_model_forward.1} parent=0 // pred_region
    _
  $region9: #{nn_model_forward.1} parent=0 // pred_fallthru
    _
  // Predicated region
  $region10: #{nn_model_forward.1} parent=0 // pred_check
    _
  $region11: #{nn_model_forward.1} parent=0 // pred_check_branch
    %13 = sbr.rel (0) target = $region13
  $region12: #{nn_model_forward.1} parent=0 // pred_region
    _
  $region13: #{nn_model_forward.1} parent=0 // pred_fallthru
    _
  %v14 = vld [vmem:[%s2] sm:$0x7]
  %v15 = vld [vmem:[%s0] sm:$0xff]
  %v16 = vld [vmem:[%s0 + $0x8] sm:$0xff]
  %19 = vst [vmem:[#allocation1] ss:$4 sm:$0xff] %v15
  %s20 = scalar_lea.vmem [#allocation1], 32
  %21 = vst [vmem:[%s20] ss:$4 sm:$0xff] %v16
  %v22 = vld.sshfl [vmem:[#allocation1] sm:$0xff pattern:$0x73625140]
  %v23 = vld.sshfl [vmem:[#allocation1 + $0x8] sm:$0xff pattern:$0x73625140]
  %v24 = vld.sshfl [vmem:[#allocation1 + $0x10] sm:$0xff pattern:$0x73625140]
  %v25 = vld.sshfl [vmem:[#allocation1 + $0x18] sm:$0xff pattern:$0x73625140]
  %v26 = vld.sshfl [vmem:[#allocation1 + $0x20] sm:$0xff pattern:$0x73625140]
  %v27 = vld.sshfl [vmem:[#allocation1 + $0x28] sm:$0xff pattern:$0x73625140]
  %v28 = vld.sshfl [vmem:[#allocation1 + $0x30] sm:$0xff pattern:$0x73625140]
  %v29 = vld.sshfl [vmem:[#allocation1 + $0x38] sm:$0xff pattern:$0x73625140]
  %v38 = vpack.c.bf16 %v22, %v22
  %v39 = vpack.c.bf16 %v23, %v23
  %v40 = vpack.c.bf16 %v24, %v24
  %v41 = vpack.c.bf16 %v25, %v25
  %v42 = vpack.c.bf16 %v26, %v26
  %v43 = vpack.c.bf16 %v27, %v27
  %v44 = vpack.c.bf16 %v28, %v28
  %v45 = vpack.c.bf16 %v29, %v29
  %v46 = vld [vmem:[%s1] sm:$0xf]
  %v47 = vld [vmem:[%s1 + $0x4] sm:$0xf]
  %v48 = vld [vmem:[%s1 + $0x8] sm:$0xf]
  %v49 = vld [vmem:[%s1 + $0xc] sm:$0xf]
  %v50 = vld [vmem:[%s1 + $0x10] sm:$0xf]
  %v51 = vld [vmem:[%s1 + $0x14] sm:$0xf]
  %v52 = vld [vmem:[%s1 + $0x18] sm:$0xf]
  %v53 = vld [vmem:[%s1 + $0x1c] sm:$0xf]
  %v54 = vld [vmem:[%s1 + $0x20] sm:$0xf]
  %v55 = vld [vmem:[%s1 + $0x24] sm:$0xf]
  %v56 = vld [vmem:[%s1 + $0x28] sm:$0xf]
  %v57 = vld [vmem:[%s1 + $0x2c] sm:$0xf]
  %v58 = vld [vmem:[%s1 + $0x30] sm:$0xf]
  %v59 = vld [vmem:[%s1 + $0x34] sm:$0xf]
  %v60 = vld [vmem:[%s1 + $0x38] sm:$0xf]
  %v61 = vld [vmem:[%s1 + $0x3c] sm:$0xf]
  %v62 = vld [vmem:[%s1 + $0x40] sm:$0xf]
  %v63 = vld [vmem:[%s1 + $0x44] sm:$0xf]
  %v64 = vld [vmem:[%s1 + $0x48] sm:$0xf]
  %v65 = vld [vmem:[%s1 + $0x4c] sm:$0xf]
  %v66 = vld [vmem:[%s1 + $0x50] sm:$0xf]
  %v67 = vld [vmem:[%s1 + $0x54] sm:$0xf]
  %v68 = vld [vmem:[%s1 + $0x58] sm:$0xf]
  %v69 = vld [vmem:[%s1 + $0x5c] sm:$0xf]
  %v70 = vld [vmem:[%s1 + $0x60] sm:$0xf]
  %v71 = vld [vmem:[%s1 + $0x64] sm:$0xf]
  %v72 = vld [vmem:[%s1 + $0x68] sm:$0xf]
  %v73 = vld [vmem:[%s1 + $0x6c] sm:$0xf]
  %v74 = vld [vmem:[%s1 + $0x70] sm:$0xf]
  %v75 = vld [vmem:[%s1 + $0x74] sm:$0xf]
  %v76 = vld [vmem:[%s1 + $0x78] sm:$0xf]
  %v77 = vld [vmem:[%s1 + $0x7c] sm:$0xf]
  %v78 = vld [vmem:[%s1 + $0x80] sm:$0xf]
  %v79 = vld [vmem:[%s1 + $0x84] sm:$0xf]
  %v80 = vld [vmem:[%s1 + $0x88] sm:$0xf]
  %v81 = vld [vmem:[%s1 + $0x8c] sm:$0xf]
  %v82 = vld [vmem:[%s1 + $0x90] sm:$0xf]
  %v83 = vld [vmem:[%s1 + $0x94] sm:$0xf]
  %v84 = vld [vmem:[%s1 + $0x98] sm:$0xf]
  %v85 = vld [vmem:[%s1 + $0x9c] sm:$0xf]
  %v86 = vld [vmem:[%s1 + $0xa0] sm:$0xf]
  %v87 = vld [vmem:[%s1 + $0xa4] sm:$0xf]
  %v88 = vld [vmem:[%s1 + $0xa8] sm:$0xf]
  %v89 = vld [vmem:[%s1 + $0xac] sm:$0xf]
  %v90 = vld [vmem:[%s1 + $0xb0] sm:$0xf]
  %v91 = vld [vmem:[%s1 + $0xb4] sm:$0xf]
  %v92 = vld [vmem:[%s1 + $0xb8] sm:$0xf]
  %v93 = vld [vmem:[%s1 + $0xbc] sm:$0xf]
  %v94 = vld [vmem:[%s1 + $0xc0] sm:$0xf]
  %v95 = vld [vmem:[%s1 + $0xc4] sm:$0xf]
  %v96 = vld [vmem:[%s1 + $0xc8] sm:$0xf]
  %v97 = vld [vmem:[%s1 + $0xcc] sm:$0xf]
  %v98 = vld [vmem:[%s1 + $0xd0] sm:$0xf]
  %v99 = vld [vmem:[%s1 + $0xd4] sm:$0xf]
  %v100 = vld [vmem:[%s1 + $0xd8] sm:$0xf]
  %v101 = vld [vmem:[%s1 + $0xdc] sm:$0xf]
  %v102 = vld [vmem:[%s1 + $0xe0] sm:$0xf]
  %v103 = vld [vmem:[%s1 + $0xe4] sm:$0xf]
  %v104 = vld [vmem:[%s1 + $0xe8] sm:$0xf]
  %v105 = vld [vmem:[%s1 + $0xec] sm:$0xf]
  %v106 = vld [vmem:[%s1 + $0xf0] sm:$0xf]
  %v107 = vld [vmem:[%s1 + $0xf4] sm:$0xf]
  %v108 = vld [vmem:[%s1 + $0xf8] sm:$0xf]
  %v109 = vld [vmem:[%s1 + $0xfc] sm:$0xf]
  %v110 = vld [vmem:[%s1 + $0x100] sm:$0xf]
  %v111 = vld [vmem:[%s1 + $0x104] sm:$0xf]
  %v112 = vld [vmem:[%s1 + $0x108] sm:$0xf]
  %v113 = vld [vmem:[%s1 + $0x10c] sm:$0xf]
  %v114 = vld [vmem:[%s1 + $0x110] sm:$0xf]
  %v115 = vld [vmem:[%s1 + $0x114] sm:$0xf]
  %v116 = vld [vmem:[%s1 + $0x118] sm:$0xf]
  %v117 = vld [vmem:[%s1 + $0x11c] sm:$0xf]
  %v118 = vld [vmem:[%s1 + $0x120] sm:$0xf]
  %v119 = vld [vmem:[%s1 + $0x124] sm:$0xf]
  %v120 = vld [vmem:[%s1 + $0x128] sm:$0xf]
  %v121 = vld [vmem:[%s1 + $0x12c] sm:$0xf]
  %v122 = vld [vmem:[%s1 + $0x130] sm:$0xf]
  %v123 = vld [vmem:[%s1 + $0x134] sm:$0xf]
  %v124 = vld [vmem:[%s1 + $0x138] sm:$0xf]
  %v125 = vld [vmem:[%s1 + $0x13c] sm:$0xf]
  %v126 = vld [vmem:[%s1 + $0x140] sm:$0xf]
  %v127 = vld [vmem:[%s1 + $0x144] sm:$0xf]
  %v128 = vld [vmem:[%s1 + $0x148] sm:$0xf]
  %v129 = vld [vmem:[%s1 + $0x14c] sm:$0xf]
  %v130 = vld [vmem:[%s1 + $0x150] sm:$0xf]
  %v131 = vld [vmem:[%s1 + $0x154] sm:$0xf]
  %v132 = vld [vmem:[%s1 + $0x158] sm:$0xf]
  %v133 = vld [vmem:[%s1 + $0x15c] sm:$0xf]
  %v134 = vld [vmem:[%s1 + $0x160] sm:$0xf]
  %v135 = vld [vmem:[%s1 + $0x164] sm:$0xf]
  %v136 = vld [vmem:[%s1 + $0x168] sm:$0xf]
  %v137 = vld [vmem:[%s1 + $0x16c] sm:$0xf]
  %v138 = vld [vmem:[%s1 + $0x170] sm:$0xf]
  %v139 = vld [vmem:[%s1 + $0x174] sm:$0xf]
  %v140 = vld [vmem:[%s1 + $0x178] sm:$0xf]
  %v141 = vld [vmem:[%s1 + $0x17c] sm:$0xf]
  %v142 = vld [vmem:[%s1 + $0x180] sm:$0xf]
  %v143 = vld [vmem:[%s1 + $0x184] sm:$0xf]
  %v144 = vld [vmem:[%s1 + $0x188] sm:$0xf]
  %v145 = vld [vmem:[%s1 + $0x18c] sm:$0xf]
  %v146 = vld [vmem:[%s1 + $0x190] sm:$0xf]
  %v147 = vld [vmem:[%s1 + $0x194] sm:$0xf]
  %v148 = vld [vmem:[%s1 + $0x198] sm:$0xf]
  %v149 = vld [vmem:[%s1 + $0x19c] sm:$0xf]
  %v150 = vld [vmem:[%s1 + $0x1a0] sm:$0xf]
  %v151 = vld [vmem:[%s1 + $0x1a4] sm:$0xf]
  %v152 = vld [vmem:[%s1 + $0x1a8] sm:$0xf]
  %v153 = vld [vmem:[%s1 + $0x1ac] sm:$0xf]
  %v154 = vld [vmem:[%s1 + $0x1b0] sm:$0xf]
  %v155 = vld [vmem:[%s1 + $0x1b4] sm:$0xf]
  %v156 = vld [vmem:[%s1 + $0x1b8] sm:$0xf]
  %v157 = vld [vmem:[%s1 + $0x1bc] sm:$0xf]
  %v158 = vld [vmem:[%s1 + $0x1c0] sm:$0xf]
  %v159 = vld [vmem:[%s1 + $0x1c4] sm:$0xf]
  %v160 = vld [vmem:[%s1 + $0x1c8] sm:$0xf]
  %v161 = vld [vmem:[%s1 + $0x1cc] sm:$0xf]
  %v162 = vld [vmem:[%s1 + $0x1d0] sm:$0xf]
  %v163 = vld [vmem:[%s1 + $0x1d4] sm:$0xf]
  %v164 = vld [vmem:[%s1 + $0x1d8] sm:$0xf]
  %v165 = vld [vmem:[%s1 + $0x1dc] sm:$0xf]
  %v166 = vld [vmem:[%s1 + $0x1e0] sm:$0xf]
  %v167 = vld [vmem:[%s1 + $0x1e4] sm:$0xf]
  %v168 = vld [vmem:[%s1 + $0x1e8] sm:$0xf]
  %v169 = vld [vmem:[%s1 + $0x1ec] sm:$0xf]
  %v170 = vld [vmem:[%s1 + $0x1f0] sm:$0xf]
  %v171 = vld [vmem:[%s1 + $0x1f4] sm:$0xf]
  %v172 = vld [vmem:[%s1 + $0x1f8] sm:$0xf]
  %v173 = vld [vmem:[%s1 + $0x1fc] sm:$0xf]
  %v174 = vperm.slane %v14, 0
  %v303 = vunpack.c.l.b16 %v46
  %v304 = vunpack.c.l.b16 %v47
  %v305 = vunpack.c.l.b16 %v48
  %v306 = vunpack.c.l.b16 %v49
  %v307 = vunpack.c.l.b16 %v50
  %v308 = vunpack.c.l.b16 %v51
  %v309 = vunpack.c.l.b16 %v52
  %v310 = vunpack.c.l.b16 %v53
  %v311 = vunpack.c.l.b16 %v54
  %v312 = vunpack.c.l.b16 %v55
  %v313 = vunpack.c.l.b16 %v56
  %v314 = vunpack.c.l.b16 %v57
  %v315 = vunpack.c.l.b16 %v58
  %v316 = vunpack.c.l.b16 %v59
  %v317 = vunpack.c.l.b16 %v60
  %v318 = vunpack.c.l.b16 %v61
  %v319 = vunpack.c.l.b16 %v62
  %v320 = vunpack.c.l.b16 %v63
  %v321 = vunpack.c.l.b16 %v64
  %v322 = vunpack.c.l.b16 %v65
  %v323 = vunpack.c.l.b16 %v66
  %v324 = vunpack.c.l.b16 %v67
  %v325 = vunpack.c.l.b16 %v68
  %v326 = vunpack.c.l.b16 %v69
  %v327 = vunpack.c.l.b16 %v70
  %v328 = vunpack.c.l.b16 %v71
  %v329 = vunpack.c.l.b16 %v72
  %v330 = vunpack.c.l.b16 %v73
  %v331 = vunpack.c.l.b16 %v74
  %v332 = vunpack.c.l.b16 %v75
  %v333 = vunpack.c.l.b16 %v76
  %v334 = vunpack.c.l.b16 %v77
  %v335 = vunpack.c.l.b16 %v78
  %v336 = vunpack.c.l.b16 %v79
  %v337 = vunpack.c.l.b16 %v80
  %v338 = vunpack.c.l.b16 %v81
  %v339 = vunpack.c.l.b16 %v82
  %v340 = vunpack.c.l.b16 %v83
  %v341 = vunpack.c.l.b16 %v84
  %v342 = vunpack.c.l.b16 %v85
  %v343 = vunpack.c.l.b16 %v86
  %v344 = vunpack.c.l.b16 %v87
  %v345 = vunpack.c.l.b16 %v88
  %v346 = vunpack.c.l.b16 %v89
  %v347 = vunpack.c.l.b16 %v90
  %v348 = vunpack.c.l.b16 %v91
  %v349 = vunpack.c.l.b16 %v92
  %v350 = vunpack.c.l.b16 %v93
  %v351 = vunpack.c.l.b16 %v94
  %v352 = vunpack.c.l.b16 %v95
  %v353 = vunpack.c.l.b16 %v96
  %v354 = vunpack.c.l.b16 %v97
  %v355 = vunpack.c.l.b16 %v98
  %v356 = vunpack.c.l.b16 %v99
  %v357 = vunpack.c.l.b16 %v100
  %v358 = vunpack.c.l.b16 %v101
  %v359 = vunpack.c.l.b16 %v102
  %v360 = vunpack.c.l.b16 %v103
  %v361 = vunpack.c.l.b16 %v104
  %v362 = vunpack.c.l.b16 %v105
  %v363 = vunpack.c.l.b16 %v106
  %v364 = vunpack.c.l.b16 %v107
  %v365 = vunpack.c.l.b16 %v108
  %v366 = vunpack.c.l.b16 %v109
  %v367 = vunpack.c.l.b16 %v110
  %v368 = vunpack.c.l.b16 %v111
  %v369 = vunpack.c.l.b16 %v112
  %v370 = vunpack.c.l.b16 %v113
  %v371 = vunpack.c.l.b16 %v114
  %v372 = vunpack.c.l.b16 %v115
  %v373 = vunpack.c.l.b16 %v116
  %v374 = vunpack.c.l.b16 %v117
  %v375 = vunpack.c.l.b16 %v118
  %v376 = vunpack.c.l.b16 %v119
  %v377 = vunpack.c.l.b16 %v120
  %v378 = vunpack.c.l.b16 %v121
  %v379 = vunpack.c.l.b16 %v122
  %v380 = vunpack.c.l.b16 %v123
  %v381 = vunpack.c.l.b16 %v124
  %v382 = vunpack.c.l.b16 %v125
  %v383 = vunpack.c.l.b16 %v126
  %v384 = vunpack.c.l.b16 %v127
  %v385 = vunpack.c.l.b16 %v128
  %v386 = vunpack.c.l.b16 %v129
  %v387 = vunpack.c.l.b16 %v130
  %v388 = vunpack.c.l.b16 %v131
  %v389 = vunpack.c.l.b16 %v132
  %v390 = vunpack.c.l.b16 %v133
  %v391 = vunpack.c.l.b16 %v134
  %v392 = vunpack.c.l.b16 %v135
  %v393 = vunpack.c.l.b16 %v136
  %v394 = vunpack.c.l.b16 %v137
  %v395 = vunpack.c.l.b16 %v138
  %v396 = vunpack.c.l.b16 %v139
  %v397 = vunpack.c.l.b16 %v140
  %v398 = vunpack.c.l.b16 %v141
  %v399 = vunpack.c.l.b16 %v142
  %v400 = vunpack.c.l.b16 %v143
  %v401 = vunpack.c.l.b16 %v144
  %v402 = vunpack.c.l.b16 %v145
  %v403 = vunpack.c.l.b16 %v146
  %v404 = vunpack.c.l.b16 %v147
  %v405 = vunpack.c.l.b16 %v148
  %v406 = vunpack.c.l.b16 %v149
  %v407 = vunpack.c.l.b16 %v150
  %v408 = vunpack.c.l.b16 %v151
  %v409 = vunpack.c.l.b16 %v152
  %v410 = vunpack.c.l.b16 %v153
  %v411 = vunpack.c.l.b16 %v154
  %v412 = vunpack.c.l.b16 %v155
  %v413 = vunpack.c.l.b16 %v156
  %v414 = vunpack.c.l.b16 %v157
  %v415 = vunpack.c.l.b16 %v158
  %v416 = vunpack.c.l.b16 %v159
  %v417 = vunpack.c.l.b16 %v160
  %v418 = vunpack.c.l.b16 %v161
  %v419 = vunpack.c.l.b16 %v162
  %v420 = vunpack.c.l.b16 %v163
  %v421 = vunpack.c.l.b16 %v164
  %v422 = vunpack.c.l.b16 %v165
  %v423 = vunpack.c.l.b16 %v166
  %v424 = vunpack.c.l.b16 %v167
  %v425 = vunpack.c.l.b16 %v168
  %v426 = vunpack.c.l.b16 %v169
  %v427 = vunpack.c.l.b16 %v170
  %v428 = vunpack.c.l.b16 %v171
  %v429 = vunpack.c.l.b16 %v172
  %v430 = vunpack.c.l.b16 %v173
  %v431 = vpack.c.b16 %v304, %v303
  %v432 = vpack.c.b16 %v306, %v305
  %v433 = vpack.c.b16 %v308, %v307
  %v434 = vpack.c.b16 %v310, %v309
  %v435 = vpack.c.b16 %v312, %v311
  %v436 = vpack.c.b16 %v314, %v313
  %v437 = vpack.c.b16 %v316, %v315
  %v438 = vpack.c.b16 %v318, %v317
  %v439 = vpack.c.b16 %v320, %v319
  %v440 = vpack.c.b16 %v322, %v321
  %v441 = vpack.c.b16 %v324, %v323
  %v442 = vpack.c.b16 %v326, %v325
  %v443 = vpack.c.b16 %v328, %v327
  %v444 = vpack.c.b16 %v330, %v329
  %v445 = vpack.c.b16 %v332, %v331
  %v446 = vpack.c.b16 %v334, %v333
  %v447 = vpack.c.b16 %v336, %v335
  %v448 = vpack.c.b16 %v338, %v337
  %v449 = vpack.c.b16 %v340, %v339
  %v450 = vpack.c.b16 %v342, %v341
  %v451 = vpack.c.b16 %v344, %v343
  %v452 = vpack.c.b16 %v346, %v345
  %v453 = vpack.c.b16 %v348, %v347
  %v454 = vpack.c.b16 %v350, %v349
  %v455 = vpack.c.b16 %v352, %v351
  %v456 = vpack.c.b16 %v354, %v353
  %v457 = vpack.c.b16 %v356, %v355
  %v458 = vpack.c.b16 %v358, %v357
  %v459 = vpack.c.b16 %v360, %v359
  %v460 = vpack.c.b16 %v362, %v361
  %v461 = vpack.c.b16 %v364, %v363
  %v462 = vpack.c.b16 %v366, %v365
  %v463 = vpack.c.b16 %v368, %v367
  %v464 = vpack.c.b16 %v370, %v369
  %v465 = vpack.c.b16 %v372, %v371
  %v466 = vpack.c.b16 %v374, %v373
  %v467 = vpack.c.b16 %v376, %v375
  %v468 = vpack.c.b16 %v378, %v377
  %v469 = vpack.c.b16 %v380, %v379
  %v470 = vpack.c.b16 %v382, %v381
  %v471 = vpack.c.b16 %v384, %v383
  %v472 = vpack.c.b16 %v386, %v385
  %v473 = vpack.c.b16 %v388, %v387
  %v474 = vpack.c.b16 %v390, %v389
  %v475 = vpack.c.b16 %v392, %v391
  %v476 = vpack.c.b16 %v394, %v393
  %v477 = vpack.c.b16 %v396, %v395
  %v478 = vpack.c.b16 %v398, %v397
  %v479 = vpack.c.b16 %v400, %v399
  %v480 = vpack.c.b16 %v402, %v401
  %v481 = vpack.c.b16 %v404, %v403
  %v482 = vpack.c.b16 %v406, %v405
  %v483 = vpack.c.b16 %v408, %v407
  %v484 = vpack.c.b16 %v410, %v409
  %v485 = vpack.c.b16 %v412, %v411
  %v486 = vpack.c.b16 %v414, %v413
  %v487 = vpack.c.b16 %v416, %v415
  %v488 = vpack.c.b16 %v418, %v417
  %v489 = vpack.c.b16 %v420, %v419
  %v490 = vpack.c.b16 %v422, %v421
  %v491 = vpack.c.b16 %v424, %v423
  %v492 = vpack.c.b16 %v426, %v425
  %v493 = vpack.c.b16 %v428, %v427
  %v494 = vpack.c.b16 %v430, %v429
  %559 = vmatpush.bf16.msra.mxu0 %v438
  %560 = vmatpush.bf16.msra.mxu0 %v437
  %561 = vmatpush.bf16.msra.mxu0 %v436
  %562 = vmatpush.bf16.msra.mxu0 %v435
  %563 = vmatpush.bf16.msra.mxu0 %v434
  %564 = vmatpush.bf16.msra.mxu0 %v433
  %565 = vmatpush.bf16.msra.mxu0 %v432
  %566 = vmatpush.bf16.msra.mxu0 %v431
  %567 = vmatmul.bf16.gmra.mxu0 %v38
  %v568 = vpop.f32.mrf.mxu0
  %v569 = vadd.f32 %v174, %v568
  %v570 = vpop.f32.mrf.mxu0
  %571 = vdwg.mxu0
  %572 = vmatpush.bf16.msra.mxu0 %v446
  %573 = vmatpush.bf16.msra.mxu0 %v445
  %574 = vmatpush.bf16.msra.mxu0 %v444
  %575 = vmatpush.bf16.msra.mxu0 %v443
  %576 = vmatpush.bf16.msra.mxu0 %v442
  %577 = vmatpush.bf16.msra.mxu0 %v441
  %578 = vmatpush.bf16.msra.mxu0 %v440
  %579 = vmatpush.bf16.msra.mxu0 %v439
  %580 = vmatmul.bf16.gmra.mxu0 %v39
  %v581 = vpop.f32.mrf.mxu0
  %v582 = vadd.f32 %v569, %v581
  %v583 = vpop.f32.mrf.mxu0
  %584 = vdwg.mxu0
  %585 = vmatpush.bf16.msra.mxu0 %v454
  %586 = vmatpush.bf16.msra.mxu0 %v453
  %587 = vmatpush.bf16.msra.mxu0 %v452
  %588 = vmatpush.bf16.msra.mxu0 %v451
  %589 = vmatpush.bf16.msra.mxu0 %v450
  %590 = vmatpush.bf16.msra.mxu0 %v449
  %591 = vmatpush.bf16.msra.mxu0 %v448
  %592 = vmatpush.bf16.msra.mxu0 %v447
  %593 = vmatmul.bf16.gmra.mxu0 %v40
  %v594 = vpop.f32.mrf.mxu0
  %v595 = vadd.f32 %v582, %v594
  %v596 = vpop.f32.mrf.mxu0
  %597 = vdwg.mxu0
  %598 = vmatpush.bf16.msra.mxu0 %v462
  %599 = vmatpush.bf16.msra.mxu0 %v461
  %600 = vmatpush.bf16.msra.mxu0 %v460
  %601 = vmatpush.bf16.msra.mxu0 %v459
  %602 = vmatpush.bf16.msra.mxu0 %v458
  %603 = vmatpush.bf16.msra.mxu0 %v457
  %604 = vmatpush.bf16.msra.mxu0 %v456
  %605 = vmatpush.bf16.msra.mxu0 %v455
  %606 = vmatmul.bf16.gmra.mxu0 %v41
  %v607 = vpop.f32.mrf.mxu0
  %v608 = vadd.f32 %v595, %v607
  %v609 = vpop.f32.mrf.mxu0
  %610 = vdwg.mxu0
  %611 = vmatpush.bf16.msra.mxu0 %v470
  %612 = vmatpush.bf16.msra.mxu0 %v469
  %613 = vmatpush.bf16.msra.mxu0 %v468
  %614 = vmatpush.bf16.msra.mxu0 %v467
  %615 = vmatpush.bf16.msra.mxu0 %v466
  %616 = vmatpush.bf16.msra.mxu0 %v465
  %617 = vmatpush.bf16.msra.mxu0 %v464
  %618 = vmatpush.bf16.msra.mxu0 %v463
  %619 = vmatmul.bf16.gmra.mxu0 %v42
  %v620 = vpop.f32.mrf.mxu0
  %v621 = vadd.f32 %v608, %v620
  %v622 = vpop.f32.mrf.mxu0
  %623 = vdwg.mxu0
  %624 = vmatpush.bf16.msra.mxu0 %v478
  %625 = vmatpush.bf16.msra.mxu0 %v477
  %626 = vmatpush.bf16.msra.mxu0 %v476
  %627 = vmatpush.bf16.msra.mxu0 %v475
  %628 = vmatpush.bf16.msra.mxu0 %v474
  %629 = vmatpush.bf16.msra.mxu0 %v473
  %630 = vmatpush.bf16.msra.mxu0 %v472
  %631 = vmatpush.bf16.msra.mxu0 %v471
  %632 = vmatmul.bf16.gmra.mxu0 %v43
  %v633 = vpop.f32.mrf.mxu0
  %v634 = vadd.f32 %v621, %v633
  %v635 = vpop.f32.mrf.mxu0
  %636 = vdwg.mxu0
  %637 = vmatpush.bf16.msra.mxu0 %v486
  %638 = vmatpush.bf16.msra.mxu0 %v485
  %639 = vmatpush.bf16.msra.mxu0 %v484
  %640 = vmatpush.bf16.msra.mxu0 %v483
  %641 = vmatpush.bf16.msra.mxu0 %v482
  %642 = vmatpush.bf16.msra.mxu0 %v481
  %643 = vmatpush.bf16.msra.mxu0 %v480
  %644 = vmatpush.bf16.msra.mxu0 %v479
  %645 = vmatmul.bf16.gmra.mxu0 %v44
  %v646 = vpop.f32.mrf.mxu0
  %v647 = vadd.f32 %v634, %v646
  %v648 = vpop.f32.mrf.mxu0
  %649 = vdwg.mxu0
  %650 = vmatpush.bf16.msra.mxu0 %v494
  %651 = vmatpush.bf16.msra.mxu0 %v493
  %652 = vmatpush.bf16.msra.mxu0 %v492
  %653 = vmatpush.bf16.msra.mxu0 %v491
  %654 = vmatpush.bf16.msra.mxu0 %v490
  %655 = vmatpush.bf16.msra.mxu0 %v489
  %656 = vmatpush.bf16.msra.mxu0 %v488
  %657 = vmatpush.bf16.msra.mxu0 %v487
  %658 = vmatmul.bf16.gmra.mxu0 %v45
  %v659 = vpop.f32.mrf.mxu0
  %v660 = vadd.f32 %v647, %v659
  %v661 = vpop.f32.mrf.mxu0
  %662 = vdwg.mxu0
  %v663 = vmax.f32 %v660, 0.0
  %v664 = vperm.slane %v14, 1
  %v665 = vmul.f32 %v663, %v664
  %vm666 = vcmask 254976
  %v667 = vsel %vm666, %v665, 0.0
  %668 = vadd.xlane.f32.xlu0 %v667
  %v669 = vpop.xlane.xlu0 %668
  %v670 = vperm.slane %v14, 2
  %v671 = vadd.f32 %v669, %v670
  %v672 = vand.u32 2147483647, %v671
  %v673 = vsub.f32 0.0, %v672
  %v674 = vmul.f32 %v673, 1.442695
  %v675 = vpow.pop %v674
  %v676 = vadd.f32 %v675, 1.0
  %v677 = vrcp.pop %v676
  %vm678 = vcmp.ge.f32.partialorder %v671, 0.0
  %v679 = vmul.f32 %v675, %v677
  %v680 = vsel %vm678, %v677, %v679
  %vm681 = vcmask 1024
  %682 = vst.msk [vmem:[%s3] sm:$0x3] %vm681, %v680
  // Predicated region
  $region14: #{nn_model_forward.1} parent=0 // pred_check
    _
  $region15: #{nn_model_forward.1} parent=0 // pred_check_branch
    %684 = sbr.rel (0) target = $region17
  $region16: #{nn_model_forward.1} parent=0 // pred_region
    _
  $region17: #{nn_model_forward.1} parent=0 // pred_fallthru
    _
  // Predicated region
  $region18: #{nn_model_forward.1} parent=0 // pred_check
    _
  $region19: #{nn_model_forward.1} parent=0 // pred_check_branch
    %686 = sbr.rel (0) target = $region21
  $region20: #{nn_model_forward.1} parent=0 // pred_region
    _
  $region21: #{nn_model_forward.1} parent=0 // pred_fallthru
    _

</llo_original>
